<compile_context>
chip_gen: v6e
topology: v6e:2x2x1
jax: 0.10.0
libtpu: 0.0.40
codegen_flags: <defaults>
</compile_context>

<pallas_src>
import jax
import jax.numpy as jnp
from jax.experimental import pallas as pl
from jax.experimental.pallas import tpu as pltpu


# ---------------------------------------------------------------------------
# Pallas kernel: one (batch, row-tile) per grid step.
#
#   x_ref      : (1, Cin, TN)  bf16   x[0] tile, channel-first
#   phi_t_ref  : (1, M,  Cin)  bf16   (W_theta^T @ phi)^T  (per batch)
#   bias_f_ref : (1, M,  1)    f32    b_theta @ phi        (per batch)
#   g_t_ref    : (1, Cg, M)    bf16   (scale * W_W) @ g    (per batch)
#   x1_ref     : (1, Cg, TN)   f32    residual tile, channel-first
#   b_w_ref    : (Cg, 1)       f32    folded W-conv + BN bias
#   z_ref      : (1, Cg, TN)          output tile (channel-first, lane-dense)
# ---------------------------------------------------------------------------
def _nonlocal_kernel(x_ref, phi_t_ref, bias_f_ref, g_t_ref, x1_ref, b_w_ref,
                     z_ref):
    x = x_ref[0]            # (Cin, TN)
    phi_t = phi_t_ref[0]    # (M, Cin)
    bias_f = bias_f_ref[0]  # (M, 1)
    g_t = g_t_ref[0]        # (Cg, M)
    x1 = x1_ref[0]          # (Cg, TN)
    b_w = b_w_ref[...]      # (Cg, 1)

    # f^T = (theta(x) @ phi)^T  -> (M, TN), fp32 accumulation on the MXU.
    f_t = jnp.dot(phi_t, x, preferred_element_type=jnp.float32) + bias_f

    # Numerically-stable softmax over M (axis 0); stats in fp32.
    m = jnp.max(f_t, axis=0, keepdims=True)        # (1, TN)
    p = jnp.exp(f_t - m)                           # (M, TN)
    denom = jnp.sum(p, axis=0, keepdims=True)      # (1, TN)

    # z^T tile = g_fused @ softmax(f)^T; 1/denom folded into the epilogue.
    zt = jnp.dot(g_t, p.astype(jnp.bfloat16),
                 preferred_element_type=jnp.float32)          # (Cg, TN)
    zt = zt * pl.reciprocal(denom, approx=True)
    z_ref[0] = (zt + b_w + x1.astype(jnp.float32)).astype(z_ref.dtype)


def _pick_row_tile(n):
    # Prefer >=2 lane-dense tiles per batch (pipeline depth + megacore);
    # cap TN at 512 so the (M, TN) f/p buffers stay small on v7x's 64 MiB VMEM.
    for tn in (512, 256, 128):
        if n % tn == 0 and n // tn >= 2:
            return tn
    for tn in (512, 256, 128):
        if n % tn == 0:
            return tn
    return n  # small N: single full-extent tile (still a legal block)


def nonlocal_block_pallas(x_cf, phi_fused_t, bias_f, g_fused_t, x1_cf, b_w_eff):
    B, Cin, N = x_cf.shape
    M = phi_fused_t.shape[1]
    Cg = x1_cf.shape[1]
    TN = _pick_row_tile(N)

    return pl.pallas_call(
        _nonlocal_kernel,
        out_shape=jax.ShapeDtypeStruct((B, Cg, N), x1_cf.dtype),
        grid=(B, N // TN),
        in_specs=[
            pl.BlockSpec((1, Cin, TN), lambda b, n: (b, 0, n)),
            pl.BlockSpec((1, M, Cin),  lambda b, n: (b, 0, 0)),
            pl.BlockSpec((1, M, 1),    lambda b, n: (b, 0, 0)),
            pl.BlockSpec((1, Cg, M),   lambda b, n: (b, 0, 0)),
            pl.BlockSpec((1, Cg, TN),  lambda b, n: (b, 0, n)),
            pl.BlockSpec((Cg, 1),      lambda b, n: (0, 0)),
        ],
        out_specs=pl.BlockSpec((1, Cg, TN), lambda b, n: (b, 0, n)),
        compiler_params=pltpu.CompilerParams(
            dimension_semantics=("parallel", "parallel")),
    )(x_cf, phi_fused_t, bias_f, g_fused_t, x1_cf, b_w_eff)


# ---------------------------------------------------------------------------
# Glue (plain JAX): the small pooled phi/g branches, weight folding, reshapes.
# No transposes of the big (B, C, N) tensors.
# ---------------------------------------------------------------------------
def conv1x1_nchw(x, w, b):
    # x: (B, Cin, H, W), w: (Cout, Cin), b: (Cout,)
    return jnp.einsum('bchw,oc->bohw', x, w) + b[None, :, None, None]


def maxpool2x2_nchw(x):
    B, C, H, W = x.shape
    return jnp.max(x.reshape(B, C, H // 2, 2, W // 2, 2), axis=(3, 5))


def twopath_nonlocal_forward(x_c, x_1, params):
    B, Cin, H, W = x_c.shape
    Cg = x_1.shape[1]
    Ci = params['w_theta'].shape[0]
    Cgi = params['w_g'].shape[0]
    N = H * W
    M = (H // 2) * (W // 2)

    # phi path: 1x1 conv + 2x2 maxpool -> (B, Ci, M)
    phi_raw = maxpool2x2_nchw(conv1x1_nchw(x_c, params['w_phi'], params['b_phi']))
    phi_raw = phi_raw.reshape(B, Ci, M)
    # g path: 1x1 conv + 2x2 maxpool   -> (B, Cgi, M)
    g_raw = maxpool2x2_nchw(conv1x1_nchw(x_1, params['w_g'], params['b_g']))
    g_raw = g_raw.reshape(B, Cgi, M)

    # Fold the theta 1x1 conv into phi:  f = x @ (W_theta^T @ phi) + b_theta @ phi
    phi_fused_t = jnp.einsum('ic,bim->bmc', params['w_theta'], phi_raw)      # (B, M, Cin)
    bias_f = jnp.einsum('i,bim->bm', params['b_theta'], phi_raw)[..., None]  # (B, M, 1)

    # Fold the W 1x1 conv + eval-mode BatchNorm into g.
    eps = 1e-5
    scale = params['bn_gamma'] / jnp.sqrt(params['bn_var'] + eps)            # (Cg,)
    shift = params['bn_beta'] - params['bn_mean'] * scale                    # (Cg,)
    w_w_s = params['w_W'] * scale[:, None]                                   # (Cg, Cgi)
    g_fused_t = jnp.einsum('gi,bim->bgm', w_w_s, g_raw)                      # (B, Cg, M)
    b_w_eff = (params['b_W'] * scale + shift)[:, None]                       # (Cg, 1)

    # Channel-first flattened views (pure reshapes, no HBM transposes).
    x_cf = x_c.reshape(B, Cin, N)
    x1_cf = x_1.reshape(B, Cg, N)

    # bf16 MXU operands; fp32 stats / accumulation / residual.
    x_b = x_cf.astype(jnp.bfloat16)
    phi_b = phi_fused_t.astype(jnp.bfloat16)
    g_b = g_fused_t.astype(jnp.bfloat16)
    bias_f = bias_f.astype(jnp.float32)
    b_w_eff = b_w_eff.astype(jnp.float32)

    z_cf = nonlocal_block_pallas(x_b, phi_b, bias_f, g_b, x1_cf, b_w_eff)
    return z_cf.reshape(B, Cg, H, W)   # already NCHW-ordered, no transpose


# Pure-JAX reference (same math, fp32, no Pallas) for verification.
def twopath_nonlocal_reference(x_c, x_1, params):
    B, Cin, H, W = x_c.shape
    Cg = x_1.shape[1]
    Ci = params['w_theta'].shape[0]
    Cgi = params['w_g'].shape[0]
    N, M = H * W, (H // 2) * (W // 2)

    g_x = maxpool2x2_nchw(conv1x1_nchw(x_1, params['w_g'], params['b_g']))
    g_x = g_x.reshape(B, Cgi, M).transpose(0, 2, 1)
    theta_x = conv1x1_nchw(x_c, params['w_theta'], params['b_theta'])
    theta_x = theta_x.reshape(B, Ci, N).transpose(0, 2, 1)
    phi_x = maxpool2x2_nchw(conv1x1_nchw(x_c, params['w_phi'], params['b_phi']))
    phi_x = phi_x.reshape(B, Ci, M)
    f = jnp.einsum('bnc,bcm->bnm', theta_x, phi_x)
    f_div_c = jax.nn.softmax(f, axis=-1)
    y = jnp.einsum('bnm,bmg->bng', f_div_c, g_x)               # (B, N, Cgi)
    y = y.transpose(0, 2, 1).reshape(B, Cgi, H, W)
    wy = conv1x1_nchw(y, params['w_W'], params['b_W'])
    eps = 1e-5
    scale = params['bn_gamma'] / jnp.sqrt(params['bn_var'] + eps)
    wy = wy * scale[None, :, None, None] + (params['bn_beta']
         - params['bn_mean'] * scale)[None, :, None, None]
    return wy + x_1


if __name__ == "__main__":
    # Small shapes consistent with the module:
    #   in_channels (nc) = 4, g_channels = 8  ->  inter = 2, inter_g = 4
    B, Cin, Cg, H, W = 2, 4, 8, 16, 16
    Ci, Cgi = Cin // 2, Cg // 2

    key = jax.random.PRNGKey(0)
    ks = jax.random.split(key, 12)

    params = {
        'w_g':     jax.random.normal(ks[0], (Cgi, Cg),  jnp.float32) * 0.1,
        'b_g':     jax.random.normal(ks[1], (Cgi,),     jnp.float32) * 0.1,
        'w_theta': jax.random.normal(ks[2], (Ci, Cin),  jnp.float32) * 0.1,
        'b_theta': jax.random.normal(ks[3], (Ci,),      jnp.float32) * 0.1,
        'w_phi':   jax.random.normal(ks[4], (Ci, Cin),  jnp.float32) * 0.1,
        'b_phi':   jax.random.normal(ks[5], (Ci,),      jnp.float32) * 0.1,
        'w_W':     jax.random.normal(ks[6], (Cg, Cgi),  jnp.float32) * 0.1,
        'b_W':     jax.random.normal(ks[7], (Cg,),      jnp.float32) * 0.1,
        # NOTE: the PyTorch module inits BN gamma/beta to 0 (making z == x_1);
        # we use nonzero deterministic values to actually exercise the kernel.
        # BN is applied in eval mode with default running stats (mean=0, var=1).
        'bn_gamma': jax.random.normal(ks[8], (Cg,), jnp.float32) * 0.5 + 1.0,
        'bn_beta':  jax.random.normal(ks[9], (Cg,), jnp.float32) * 0.1,
        'bn_mean':  jnp.zeros((Cg,), jnp.float32),
        'bn_var':   jnp.ones((Cg,), jnp.float32),
    }

    x_c = jax.random.uniform(ks[10], (B, Cin, H, W), jnp.float32)   # x[0]
    x_1 = jax.random.uniform(ks[11], (B, Cg, H, W), jnp.float32)    # x[1]

    z = twopath_nonlocal_forward(x_c, x_1, params)
    z = jax.block_until_ready(z)

    z_ref = twopath_nonlocal_reference(x_c, x_1, params)
    assert z.shape == (B, Cg, H, W)
    # bf16 MXU operands + approx reciprocal => relaxed tolerance vs fp32 ref.
    assert jnp.allclose(z, z_ref, atol=2e-2, rtol=2e-2), (
        f"mismatch vs reference, max abs err = {jnp.max(jnp.abs(z - z_ref))}")

    print("KERNEL_OK")
</pallas_src>

<mosaic_0001>
module attributes {stable_mosaic.version = 11 : i64} {
  func.func @_nonlocal_kernel(%arg0: i32, %arg1: i32, %arg2: memref<1x4x128xbf16, #tpu.memory_space<vmem>>, %arg3: memref<1x64x4xbf16, #tpu.memory_space<vmem>>, %arg4: memref<1x64x1xf32, #tpu.memory_space<vmem>>, %arg5: memref<1x8x64xbf16, #tpu.memory_space<vmem>>, %arg6: memref<1x8x128xf32, #tpu.memory_space<vmem>>, %arg7: memref<8x1xf32, #tpu.memory_space<vmem>>, %arg8: memref<1x8x128xf32, #tpu.memory_space<vmem>>) attributes {dimension_semantics = [#tpu.dimension_semantics<parallel>, #tpu.dimension_semantics<parallel>], iteration_bounds = array<i64: 2, 2>, scalar_prefetch = 0 : i64, scratch_operands = 0 : i64, tpu.core_type = #tpu.core_type<tc>, window_params = [{transform_indices = @transform_0, window_bounds = array<i64: 1, 4, 128>}, {transform_indices = @transform_1, window_bounds = array<i64: 1, 64, 4>}, {transform_indices = @transform_2, window_bounds = array<i64: 1, 64, 1>}, {transform_indices = @transform_3, window_bounds = array<i64: 1, 8, 64>}, {transform_indices = @transform_4, window_bounds = array<i64: 1, 8, 128>}, {pipeline_mode = #tpu.pipeline_mode<synchronous>, transform_indices = @transform_5, window_bounds = array<i64: 8, 1>}, {transform_indices = @transform_6, window_bounds = array<i64: 1, 8, 128>}]} {
    %c0 = arith.constant 0 : index
    %c0_0 = arith.constant 0 : index
    %c0_1 = arith.constant 0 : index
    %0 = vector.load %arg2[%c0, %c0_0, %c0_1] : memref<1x4x128xbf16, #tpu.memory_space<vmem>>, vector<1x4x128xbf16>
    %1 = vector.shape_cast %0 : vector<1x4x128xbf16> to vector<4x128xbf16>
    %c0_2 = arith.constant 0 : index
    %c0_3 = arith.constant 0 : index
    %c0_4 = arith.constant 0 : index
    %2 = vector.load %arg3[%c0_2, %c0_3, %c0_4] : memref<1x64x4xbf16, #tpu.memory_space<vmem>>, vector<1x64x4xbf16>
    %3 = vector.shape_cast %2 : vector<1x64x4xbf16> to vector<64x4xbf16>
    %c0_5 = arith.constant 0 : index
    %c0_6 = arith.constant 0 : index
    %c0_7 = arith.constant 0 : index
    %4 = vector.load %arg4[%c0_5, %c0_6, %c0_7] : memref<1x64x1xf32, #tpu.memory_space<vmem>>, vector<1x64x1xf32>
    %5 = vector.shape_cast %4 : vector<1x64x1xf32> to vector<64x1xf32>
    %c0_8 = arith.constant 0 : index
    %c0_9 = arith.constant 0 : index
    %c0_10 = arith.constant 0 : index
    %6 = vector.load %arg5[%c0_8, %c0_9, %c0_10] : memref<1x8x64xbf16, #tpu.memory_space<vmem>>, vector<1x8x64xbf16>
    %7 = vector.shape_cast %6 : vector<1x8x64xbf16> to vector<8x64xbf16>
    %c0_11 = arith.constant 0 : index
    %c0_12 = arith.constant 0 : index
    %c0_13 = arith.constant 0 : index
    %8 = vector.load %arg6[%c0_11, %c0_12, %c0_13] : memref<1x8x128xf32, #tpu.memory_space<vmem>>, vector<1x8x128xf32>
    %9 = vector.shape_cast %8 : vector<1x8x128xf32> to vector<8x128xf32>
    %c0_14 = arith.constant 0 : index
    %c0_15 = arith.constant 0 : index
    %10 = vector.load %arg7[%c0_14, %c0_15] : memref<8x1xf32, #tpu.memory_space<vmem>>, vector<8x1xf32>
    %cst = arith.constant dense<0.000000e+00> : vector<64x128xf32>
    %11 = tpu.matmul %3, %1, %cst {dimension_numbers = #tpu.dot_dimension_numbers<[1], [0], [0], [1], [0, 0, 1, 1], [], []>} : vector<64x4xbf16>, vector<4x128xbf16>, vector<64x128xf32> -> vector<64x128xf32>
    %12 = vector.broadcast %5 : vector<64x1xf32> to vector<64x128xf32>
    %13 = arith.addf %11, %12 : vector<64x128xf32>
    %cst_16 = arith.constant dense<0xFF800000> : vector<128xf32>
    %14 = vector.multi_reduction <maximumf>, %13, %cst_16 [0] : vector<64x128xf32> to vector<128xf32>
    %15 = vector.shape_cast %14 : vector<128xf32> to vector<1x128xf32>
    %16 = vector.broadcast %15 : vector<1x128xf32> to vector<64x128xf32>
    %17 = arith.subf %13, %16 : vector<64x128xf32>
    %18 = math.exp %17 : vector<64x128xf32>
    %cst_17 = arith.constant dense<0.000000e+00> : vector<128xf32>
    %19 = vector.multi_reduction <add>, %18, %cst_17 [0] : vector<64x128xf32> to vector<128xf32>
    %20 = vector.shape_cast %19 : vector<128xf32> to vector<1x128xf32>
    %21 = arith.truncf %18 : vector<64x128xf32> to vector<64x128xbf16>
    %cst_18 = arith.constant dense<0.000000e+00> : vector<8x128xf32>
    %22 = tpu.matmul %7, %21, %cst_18 {dimension_numbers = #tpu.dot_dimension_numbers<[1], [0], [0], [1], [0, 0, 1, 1], [], []>} : vector<8x64xbf16>, vector<64x128xbf16>, vector<8x128xf32> -> vector<8x128xf32>
    %23 = tpu.reciprocal %20 {approx = true} : vector<1x128xf32> -> vector<1x128xf32>
    %24 = vector.broadcast %23 : vector<1x128xf32> to vector<8x128xf32>
    %25 = arith.mulf %22, %24 : vector<8x128xf32>
    %26 = vector.broadcast %10 : vector<8x1xf32> to vector<8x128xf32>
    %27 = arith.addf %25, %26 : vector<8x128xf32>
    %28 = arith.addf %27, %9 : vector<8x128xf32>
    %c0_19 = arith.constant 0 : index
    %c0_20 = arith.constant 0 : index
    %c0_21 = arith.constant 0 : index
    %29 = vector.load %arg8[%c0_19, %c0_20, %c0_21] : memref<1x8x128xf32, #tpu.memory_space<vmem>>, vector<1x8x128xf32>
    %30 = vector.shape_cast %29 : vector<1x8x128xf32> to vector<8x128xf32>
    %31 = vector.shape_cast %28 : vector<8x128xf32> to vector<1x8x128xf32>
    tpu.vector_store %arg8[%c0_19, %c0_20, %c0_21], %31 {strides = array<i32>} : memref<1x8x128xf32, #tpu.memory_space<vmem>>, vector<1x8x128xf32>,
    return
  }
  func.func @transform_0(%arg0: i32, %arg1: i32) -> (i32, i32, i32) {
    %c0_i32 = arith.constant 0 : i32
    %c0_i32_0 = arith.constant 0 : i32
    return %arg0, %c0_i32, %arg1 : i32, i32, i32
  }
  func.func @transform_1(%arg0: i32, %arg1: i32) -> (i32, i32, i32) {
    %c0_i32 = arith.constant 0 : i32
    %c0_i32_0 = arith.constant 0 : i32
    %c0_i32_1 = arith.constant 0 : i32
    return %arg0, %c0_i32, %c0_i32_0 : i32, i32, i32
  }
  func.func @transform_2(%arg0: i32, %arg1: i32) -> (i32, i32, i32) {
    %c0_i32 = arith.constant 0 : i32
    %c0_i32_0 = arith.constant 0 : i32
    %c0_i32_1 = arith.constant 0 : i32
    return %arg0, %c0_i32, %c0_i32_0 : i32, i32, i32
  }
  func.func @transform_3(%arg0: i32, %arg1: i32) -> (i32, i32, i32) {
    %c0_i32 = arith.constant 0 : i32
    %c0_i32_0 = arith.constant 0 : i32
    %c0_i32_1 = arith.constant 0 : i32
    return %arg0, %c0_i32, %c0_i32_0 : i32, i32, i32
  }
  func.func @transform_4(%arg0: i32, %arg1: i32) -> (i32, i32, i32) {
    %c0_i32 = arith.constant 0 : i32
    %c0_i32_0 = arith.constant 0 : i32
    return %arg0, %c0_i32, %arg1 : i32, i32, i32
  }
  func.func @transform_5(%arg0: i32, %arg1: i32) -> (i32, i32) {
    %c0_i32 = arith.constant 0 : i32
    %c0_i32_0 = arith.constant 0 : i32
    %c0_i32_1 = arith.constant 0 : i32
    return %c0_i32, %c0_i32_0 : i32, i32
  }
  func.func @transform_6(%arg0: i32, %arg1: i32) -> (i32, i32, i32) {
    %c0_i32 = arith.constant 0 : i32
    %c0_i32_0 = arith.constant 0 : i32
    return %arg0, %c0_i32, %arg1 : i32, i32, i32
  }
}

</mosaic_0001>

<llo_original>
// kernel: tpu_custom_call.1
$region0: #{tpu_custom_call.1}
  #allocation0 [shape = 'u32[]', space=smem, size = 0x4, offset = 0x4, fixed_abs, tag = 'smem constant byte address 0x4 - core index']
  #allocation1 [shape = 'u32[144,128]{1,0:T(1,128)}', space=vmem, size = 0x12000, scoped, tag = 'internal scratch']
  %s0 = inlined_call_operand.vmem [shape: bf16[2,4,256], index: 0, kind: input, shape index: {}]
  %s1 = inlined_call_operand.vmem [shape: bf16[2,64,4], index: 1, kind: input, shape index: {}]
  %s2 = inlined_call_operand.vmem [shape: f32[2,64,1], index: 2, kind: input, shape index: {}]
  %s3 = inlined_call_operand.vmem [shape: bf16[2,8,64], index: 3, kind: input, shape index: {}]
  %s4 = inlined_call_operand.vmem [shape: f32[2,8,256], index: 4, kind: input, shape index: {}]
  %s5 = inlined_call_operand.vmem [shape: f32[8,1], index: 5, kind: input, shape index: {}]
  %s6 = inlined_call_operand.hbm [shape: f32[2,8,256], index: 6, kind: output, shape index: {}]
  %s7 = sld [smem:[#allocation0]]
  $region57: #{tpu_custom_call.1} parent=0
    _
  %s9 = ssub.s32 1, %s7
  %s10 = scalar_select 0, %s9, %s7
  $region1: #{tpu_custom_call.1} parent=0
    #allocation2 [shape = 'u8[8192]{0}', space=vmem, size = 0x2000, scoped, tag = 'output window, operand 0']
    #allocation3 [shape = 's32[2]{0}', space=sflag, size = 0x8, scoped, tag = 'scoped memory for tpu_custom_call.1']
    %11 = vsyncpa [#allocation3], 0
    %s12 = scalar_lea.sflag [#allocation3], 1
    %13 = vsyncpa %s12, 0
    loop: start=0, step=1, limit=6
    $region2: #{tpu_custom_call.1} parent=1 // loop_pre_header
      _
    $region3: #{tpu_custom_call.1} parent=1 // loop_header
      %s15 = sphi 0, %s19
      %p16 = scmp.ge.s32.totalorder %s15, 6
      %s22 = sphi 0, %s34
      %s23 = sphi 0, %s30
      %s24 = sphi 0, %s22
      %s25 = sphi 0, %s23
      %s26 = sphi 0, %s24
      %s27 = sphi 0, %s25
      %s39 = sphi 0, %s41
      %s42 = sphi 0, %s39
      %s43 = sphi 0, %s42
      %s59 = sphi 0, %s43
      %s65 = sphi 0, %s67
      %s68 = sphi 0, %s65
      %s69 = sphi 0, %s68
      %s85 = sphi 0, %s69
      %s91 = sphi 0, %s93
      %s94 = sphi 0, %s91
      %s95 = sphi 0, %s94
      %s111 = sphi 0, %s95
      %s117 = sphi 0, %s119
      %s120 = sphi 0, %s117
      %s121 = sphi 0, %s120
      %s137 = sphi 0, %s121
      %s145 = sphi 0, %s147
      %s148 = sphi 0, %s145
      %s149 = sphi 0, %s148
      %s165 = sphi 0, %s149
      %s169 = sphi 0, %s169
      %s171 = sphi 0, %s169
      %s172 = sphi 0, %s171
      %s186 = sphi 0, %s172
      %s194 = sphi 0, %s196
      %s197 = sphi 0, %s194
      %s198 = sphi 0, %s197
      %s214 = sphi 0, %s198
    $region4: #{tpu_custom_call.1} parent=1 // loop_header_branch
      %18 = sbr.rel (%p16) target = $region8
    $region5: #{tpu_custom_call.1} parent=1 // loop_body
      %s20 = ssub.s32 %s15, 1
      %s21 = ssub.s32 %s15, 2
      %s28 = sadd.s32 1, %s23
      %p29 = scmp.ge.s32.totalorder %s28, 2
      %s30 = scalar_select %p29, 0, %s28
      %s31 = sadd.s32 1, %s22
      %s32 = scalar_select %p29, %s31, %s22
      %p33 = scmp.ge.s32.totalorder %s32, 2
      %s34 = scalar_select %p33, 0, %s32
      %s35 = ssub.s32 %s22, %s34
      %s36 = ssub.s32 %s23, %s30
      %s37 = sor.u32 %s35, %s36
      %p38 = scmp.eq.s32.totalorder %s37, 0
      %s40 = sadd.s32 %s39, 1
      %s41 = scalar_select %p38, %s39, %s40
      %p44 = pneg %p38
      %p45 = scmp.eq.s32.totalorder %s15, 3
      %p46 = por %p44, %p45
      %p47 = scmp.ne.s32.totalorder %s39, %s42
      %p48 = scmp.eq.s32.totalorder %s15, 0
      %p49 = por %p47, %p48
      %p50 = scmp.ne.s32.totalorder %s39, %s42
      %p51 = scmp.eq.s32.totalorder %s20, 3
      %p52 = por %p50, %p51
      %p53 = scmp.ne.s32.totalorder %s42, %s43
      %p54 = scmp.eq.s32.totalorder %s20, 0
      %p55 = por %p53, %p54
      %p56 = scmp.ne.s32.totalorder %s42, %s43
      %p57 = scmp.eq.s32.totalorder %s21, 3
      %p58 = por %p56, %p57
      %p60 = scmp.ne.s32.totalorder %s43, %s59
      %p61 = scmp.eq.s32.totalorder %s21, 0
      %p62 = por %p60, %p61
      %s63 = ssub.s32 %s22, %s34
      %p64 = scmp.eq.s32.totalorder %s63, 0
      %s66 = sadd.s32 %s65, 1
      %s67 = scalar_select %p64, %s65, %s66
      %p70 = pneg %p64
      %p71 = scmp.eq.s32.totalorder %s15, 3
      %p72 = por %p70, %p71
      %p73 = scmp.ne.s32.totalorder %s65, %s68
      %p74 = scmp.eq.s32.totalorder %s15, 0
      %p75 = por %p73, %p74
      %p76 = scmp.ne.s32.totalorder %s65, %s68
      %p77 = scmp.eq.s32.totalorder %s20, 3
      %p78 = por %p76, %p77
      %p79 = scmp.ne.s32.totalorder %s68, %s69
      %p80 = scmp.eq.s32.totalorder %s20, 0
      %p81 = por %p79, %p80
      %p82 = scmp.ne.s32.totalorder %s68, %s69
      %p83 = scmp.eq.s32.totalorder %s21, 3
      %p84 = por %p82, %p83
      %p86 = scmp.ne.s32.totalorder %s69, %s85
      %p87 = scmp.eq.s32.totalorder %s21, 0
      %p88 = por %p86, %p87
      %s89 = ssub.s32 %s22, %s34
      %p90 = scmp.eq.s32.totalorder %s89, 0
      %s92 = sadd.s32 %s91, 1
      %s93 = scalar_select %p90, %s91, %s92
      %p96 = pneg %p90
      %p97 = scmp.eq.s32.totalorder %s15, 3
      %p98 = por %p96, %p97
      %p99 = scmp.ne.s32.totalorder %s91, %s94
      %p100 = scmp.eq.s32.totalorder %s15, 0
      %p101 = por %p99, %p100
      %p102 = scmp.ne.s32.totalorder %s91, %s94
      %p103 = scmp.eq.s32.totalorder %s20, 3
      %p104 = por %p102, %p103
      %p105 = scmp.ne.s32.totalorder %s94, %s95
      %p106 = scmp.eq.s32.totalorder %s20, 0
      %p107 = por %p105, %p106
      %p108 = scmp.ne.s32.totalorder %s94, %s95
      %p109 = scmp.eq.s32.totalorder %s21, 3
      %p110 = por %p108, %p109
      %p112 = scmp.ne.s32.totalorder %s95, %s111
      %p113 = scmp.eq.s32.totalorder %s21, 0
      %p114 = por %p112, %p113
      %s115 = ssub.s32 %s22, %s34
      %p116 = scmp.eq.s32.totalorder %s115, 0
      %s118 = sadd.s32 %s117, 1
      %s119 = scalar_select %p116, %s117, %s118
      %p122 = pneg %p116
      %p123 = scmp.eq.s32.totalorder %s15, 3
      %p124 = por %p122, %p123
      %p125 = scmp.ne.s32.totalorder %s117, %s120
      %p126 = scmp.eq.s32.totalorder %s15, 0
      %p127 = por %p125, %p126
      %p128 = scmp.ne.s32.totalorder %s117, %s120
      %p129 = scmp.eq.s32.totalorder %s20, 3
      %p130 = por %p128, %p129
      %p131 = scmp.ne.s32.totalorder %s120, %s121
      %p132 = scmp.eq.s32.totalorder %s20, 0
      %p133 = por %p131, %p132
      %p134 = scmp.ne.s32.totalorder %s120, %s121
      %p135 = scmp.eq.s32.totalorder %s21, 3
      %p136 = por %p134, %p135
      %p138 = scmp.ne.s32.totalorder %s121, %s137
      %p139 = scmp.eq.s32.totalorder %s21, 0
      %p140 = por %p138, %p139
      %s141 = ssub.s32 %s22, %s34
      %s142 = ssub.s32 %s23, %s30
      %s143 = sor.u32 %s141, %s142
      %p144 = scmp.eq.s32.totalorder %s143, 0
      %s146 = sadd.s32 %s145, 1
      %s147 = scalar_select %p144, %s145, %s146
      %p150 = pneg %p144
      %p151 = scmp.eq.s32.totalorder %s15, 3
      %p152 = por %p150, %p151
      %p153 = scmp.ne.s32.totalorder %s145, %s148
      %p154 = scmp.eq.s32.totalorder %s15, 0
      %p155 = por %p153, %p154
      %p156 = scmp.ne.s32.totalorder %s145, %s148
      %p157 = scmp.eq.s32.totalorder %s20, 3
      %p158 = por %p156, %p157
      %p159 = scmp.ne.s32.totalorder %s148, %s149
      %p160 = scmp.eq.s32.totalorder %s20, 0
      %p161 = por %p159, %p160
      %p162 = scmp.ne.s32.totalorder %s148, %s149
      %p163 = scmp.eq.s32.totalorder %s21, 3
      %p164 = por %p162, %p163
      %p166 = scmp.ne.s32.totalorder %s149, %s165
      %p167 = scmp.eq.s32.totalorder %s21, 0
      %p168 = por %p166, %p167
      %s170 = sadd.s32 %s169, 1
      %p173 = scmp.eq.s32.totalorder %s15, 3
      %p174 = scmp.ne.s32.totalorder %s169, %s171
      %p175 = scmp.eq.s32.totalorder %s15, 0
      %p176 = por %p174, %p175
      %p177 = scmp.ne.s32.totalorder %s169, %s171
      %p178 = scmp.eq.s32.totalorder %s20, 3
      %p179 = por %p177, %p178
      %p180 = scmp.ne.s32.totalorder %s171, %s172
      %p181 = scmp.eq.s32.totalorder %s20, 0
      %p182 = por %p180, %p181
      %p183 = scmp.ne.s32.totalorder %s171, %s172
      %p184 = scmp.eq.s32.totalorder %s21, 3
      %p185 = por %p183, %p184
      %p187 = scmp.ne.s32.totalorder %s172, %s186
      %p188 = scmp.eq.s32.totalorder %s21, 0
      %p189 = por %p187, %p188
      %s190 = ssub.s32 %s22, %s34
      %s191 = ssub.s32 %s23, %s30
      %s192 = sor.u32 %s190, %s191
      %p193 = scmp.eq.s32.totalorder %s192, 0
      %s195 = sadd.s32 %s194, 1
      %s196 = scalar_select %p193, %s194, %s195
      %p199 = pneg %p193
      %p200 = scmp.eq.s32.totalorder %s15, 3
      %p201 = por %p199, %p200
      %p202 = scmp.ne.s32.totalorder %s194, %s197
      %p203 = scmp.eq.s32.totalorder %s15, 0
      %p204 = por %p202, %p203
      %p205 = scmp.ne.s32.totalorder %s194, %s197
      %p206 = scmp.eq.s32.totalorder %s20, 3
      %p207 = por %p205, %p206
      %p208 = scmp.ne.s32.totalorder %s197, %s198
      %p209 = scmp.eq.s32.totalorder %s20, 0
      %p210 = por %p208, %p209
      %p211 = scmp.ne.s32.totalorder %s197, %s198
      %p212 = scmp.eq.s32.totalorder %s21, 3
      %p213 = por %p211, %p212
      %p215 = scmp.ne.s32.totalorder %s198, %s214
      %p216 = scmp.eq.s32.totalorder %s21, 0
      %p217 = por %p215, %p216
      %p218 = scmp.le.s32.totalorder 1, %s15
      %p219 = scmp.lt.s32.totalorder %s15, 5
      %p220 = pnand %p218, %p219
      %p221 = pneg %p220
      // Predicated region
      $region9: #{tpu_custom_call.1} parent=5 // pred_check
        _
      $region10: #{tpu_custom_call.1} parent=5 // pred_check_branch
        %223 = sbr.rel (%p220) target = $region12
      $region11: #{tpu_custom_call.1} parent=5 // pred_region
        %s224 = ssub.s32 %s15, 1
        // Predicated region
        $region13: #{tpu_custom_call.1} parent=11 // pred_check
          %p225 = pneg %p182
        $region14: #{tpu_custom_call.1} parent=11 // pred_check_branch
          %227 = sbr.rel (%p225) target = $region16
        $region15: #{tpu_custom_call.1} parent=11 // pred_region
          _
        $region16: #{tpu_custom_call.1} parent=11 // pred_fallthru
          _
      $region12: #{tpu_custom_call.1} parent=5 // pred_fallthru
        _
      %p228 = scmp.lt.s32.totalorder %s15, 4
      // Predicated region
      $region17: #{tpu_custom_call.1} parent=5 // pred_check
        %p229 = pneg %p228
      $region18: #{tpu_custom_call.1} parent=5 // pred_check_branch
        %231 = sbr.rel (%p229) target = $region20
      $region19: #{tpu_custom_call.1} parent=5 // pred_region
        // Predicated region
        $region21: #{tpu_custom_call.1} parent=19 // pred_check
          %p232 = pneg %p49
        $region22: #{tpu_custom_call.1} parent=19 // pred_check_branch
          %234 = sbr.rel (%p232) target = $region24
        $region23: #{tpu_custom_call.1} parent=19 // pred_region
          %p235 = scmp.lt.s32.totalorder %s22, 1
          %s236 = scalar_select %p235, %s22, 1
          %p237 = scmp.lt.s32.totalorder %s23, 1
          %s238 = scalar_select %p237, %s23, 1
          %s239 = smul.addr %s236, 2
          %s240 = sadd.s32 %s238, %s239
          %s241 = smul.addr %s240, 2
          %s242 = scalar_lea.vmem %s0, %s241
        $region24: #{tpu_custom_call.1} parent=19 // pred_fallthru
          _
        // Predicated region
        $region25: #{tpu_custom_call.1} parent=19 // pred_check
          %p243 = pneg %p75
        $region26: #{tpu_custom_call.1} parent=19 // pred_check_branch
          %245 = sbr.rel (%p243) target = $region28
        $region27: #{tpu_custom_call.1} parent=19 // pred_region
          %p246 = scmp.lt.s32.totalorder %s22, 1
          %s247 = scalar_select %p246, %s22, 1
          %s248 = smul.addr %s247, 8
          %s249 = smul.addr %s248, 4
          %s250 = scalar_lea.vmem %s1, %s249
        $region28: #{tpu_custom_call.1} parent=19 // pred_fallthru
          _
        // Predicated region
        $region29: #{tpu_custom_call.1} parent=19 // pred_check
          %p251 = pneg %p101
        $region30: #{tpu_custom_call.1} parent=19 // pred_check_branch
          %253 = sbr.rel (%p251) target = $region32
        $region31: #{tpu_custom_call.1} parent=19 // pred_region
          %p254 = scmp.lt.s32.totalorder %s22, 1
          %s255 = scalar_select %p254, %s22, 1
          %s256 = smul.addr %s255, 8
          %s257 = smul.addr %s256, 8
          %s258 = scalar_lea.vmem %s2, %s257
        $region32: #{tpu_custom_call.1} parent=19 // pred_fallthru
          _
        // Predicated region
        $region33: #{tpu_custom_call.1} parent=19 // pred_check
          %p259 = pneg %p127
        $region34: #{tpu_custom_call.1} parent=19 // pred_check_branch
          %261 = sbr.rel (%p259) target = $region36
        $region35: #{tpu_custom_call.1} parent=19 // pred_region
          %p262 = scmp.lt.s32.totalorder %s22, 1
          %s263 = scalar_select %p262, %s22, 1
          %s264 = smul.addr %s263, 4
          %s265 = scalar_lea.vmem %s3, %s264
        $region36: #{tpu_custom_call.1} parent=19 // pred_fallthru
          _
        // Predicated region
        $region37: #{tpu_custom_call.1} parent=19 // pred_check
          %p266 = pneg %p155
        $region38: #{tpu_custom_call.1} parent=19 // pred_check_branch
          %268 = sbr.rel (%p266) target = $region40
        $region39: #{tpu_custom_call.1} parent=19 // pred_region
          %p269 = scmp.lt.s32.totalorder %s22, 1
          %s270 = scalar_select %p269, %s22, 1
          %p271 = scmp.lt.s32.totalorder %s23, 1
          %s272 = scalar_select %p271, %s23, 1
          %s273 = smul.addr %s270, 2
          %s274 = sadd.s32 %s272, %s273
          %s275 = smul.addr %s274, 8
          %s276 = scalar_lea.vmem %s4, %s275
        $region40: #{tpu_custom_call.1} parent=19 // pred_fallthru
          _
      $region20: #{tpu_custom_call.1} parent=5 // pred_fallthru
        _
      %p277 = scmp.le.s32.totalorder 1, %s15
      %p278 = scmp.lt.s32.totalorder %s15, 5
      %p279 = pnand %p277, %p278
      %p280 = pneg %p279
      // Predicated region
      $region41: #{tpu_custom_call.1} parent=5 // pred_check
        _
      $region42: #{tpu_custom_call.1} parent=5 // pred_check_branch
        %282 = sbr.rel (%p279) target = $region44
      $region43: #{tpu_custom_call.1} parent=5 // pred_region
        %s283 = ssub.s32 %s15, 1
        %p284 = scmp.lt.s32.totalorder %s24, 1
        %s285 = scalar_select %p284, %s24, 1
        %p286 = scmp.lt.s32.totalorder %s25, 1
        %s287 = scalar_select %p286, %s25, 1
        %s288 = smul.addr %s285, 2
        %s289 = sadd.s32 %s287, %s288
        %s290 = smul.addr %s289, 2
        %s291 = scalar_lea.vmem %s0, %s290
        %p292 = pneg %p55
        %p293 = pneg %p52
        %p294 = scmp.lt.s32.totalorder %s24, 1
        %s295 = scalar_select %p294, %s24, 1
        %s296 = smul.addr %s295, 8
        %s297 = smul.addr %s296, 4
        %s298 = scalar_lea.vmem %s1, %s297
        %p299 = pneg %p81
        %p300 = pneg %p78
        %p301 = scmp.lt.s32.totalorder %s24, 1
        %s302 = scalar_select %p301, %s24, 1
        %s303 = smul.addr %s302, 8
        %s304 = smul.addr %s303, 8
        %s305 = scalar_lea.vmem %s2, %s304
        %p306 = pneg %p107
        %p307 = pneg %p104
        %p308 = scmp.lt.s32.totalorder %s24, 1
        %s309 = scalar_select %p308, %s24, 1
        %s310 = smul.addr %s309, 4
        %s311 = scalar_lea.vmem %s3, %s310
        %p312 = pneg %p133
        %p313 = pneg %p130
        %p314 = scmp.lt.s32.totalorder %s24, 1
        %s315 = scalar_select %p314, %s24, 1
        %p316 = scmp.lt.s32.totalorder %s25, 1
        %s317 = scalar_select %p316, %s25, 1
        %s318 = smul.addr %s315, 2
        %s319 = sadd.s32 %s317, %s318
        %s320 = smul.addr %s319, 8
        %s321 = scalar_lea.vmem %s4, %s320
        %p322 = pneg %p161
        %p323 = pneg %p158
        %p324 = pneg %p182
        %p325 = pneg %p179
        %p326 = pneg %p210
        %p327 = pneg %p207
        %s328 = sand.u32 %s197, 1
        %s329 = scalar_lea.sflag [#allocation3], %s328
        %s330 = sand.u32 %s197, 1
        %s331 = smul.addr %s330, 8
        %s332 = scalar_lea.vmem [#allocation2], %s331
        %p333 = scmp.lt.s32.totalorder %s24, 1
        %s334 = scalar_select %p333, %s24, 1
        %p335 = scmp.lt.s32.totalorder %s25, 1
        %s336 = scalar_select %p335, %s25, 1
        %s337 = smul.addr %s334, 2
        %s338 = sadd.s32 %s336, %s337
        %s339 = smul.addr %s338, 2
        %s340 = scalar_lea.vmem %s0, %s339
        %p341 = scmp.lt.s32.totalorder %s24, 1
        %s342 = scalar_select %p341, %s24, 1
        %s343 = smul.addr %s342, 8
        %s344 = smul.addr %s343, 4
        %s345 = scalar_lea.vmem %s1, %s344
        %p346 = scmp.lt.s32.totalorder %s24, 1
        %s347 = scalar_select %p346, %s24, 1
        %s348 = smul.addr %s347, 8
        %s349 = smul.addr %s348, 8
        %s350 = scalar_lea.vmem %s2, %s349
        %p351 = scmp.lt.s32.totalorder %s24, 1
        %s352 = scalar_select %p351, %s24, 1
        %s353 = smul.addr %s352, 4
        %s354 = scalar_lea.vmem %s3, %s353
        %p355 = scmp.lt.s32.totalorder %s24, 1
        %s356 = scalar_select %p355, %s24, 1
        %p357 = scmp.lt.s32.totalorder %s25, 1
        %s358 = scalar_select %p357, %s25, 1
        %s359 = smul.addr %s356, 2
        %s360 = sadd.s32 %s358, %s359
        %s361 = smul.addr %s360, 8
        %s362 = scalar_lea.vmem %s4, %s361
        %v364 = vld [vmem:[%s340] sm:$0x3]
        %v365 = vld [vmem:[%s345] sm:$0xf]
        %v366 = vld [vmem:[%s345 + $0x4] sm:$0xf]
        %v367 = vld [vmem:[%s345 + $0x8] sm:$0xf]
        %v368 = vld [vmem:[%s345 + $0xc] sm:$0xf]
        %v369 = vld [vmem:[%s345 + $0x10] sm:$0xf]
        %v370 = vld [vmem:[%s345 + $0x14] sm:$0xf]
        %v371 = vld [vmem:[%s345 + $0x18] sm:$0xf]
        %v372 = vld [vmem:[%s345 + $0x1c] sm:$0xf]
        %v373 = vld [vmem:[%s350] sm:$0xff]
        %v374 = vld [vmem:[%s350 + $0x8] sm:$0xff]
        %v375 = vld [vmem:[%s350 + $0x10] sm:$0xff]
        %v376 = vld [vmem:[%s350 + $0x18] sm:$0xff]
        %v377 = vld [vmem:[%s350 + $0x20] sm:$0xff]
        %v378 = vld [vmem:[%s350 + $0x28] sm:$0xff]
        %v379 = vld [vmem:[%s350 + $0x30] sm:$0xff]
        %v380 = vld [vmem:[%s350 + $0x38] sm:$0xff]
        %v381 = vld [vmem:[%s354] sm:$0xf]
        %v382 = vld [vmem:[%s362] sm:$0xff]
        %v383 = vld [vmem:[%s5] sm:$0xff]
        %385 = vset.pattern.permute.xlu0 0
        %386 = vperm.xlu0 %385, %v373
        %v387 = vpop.permute.xlu0 %386
        %390 = vset.pattern.permute.xlu0 0
        %391 = vperm.xlu0 %390, %v374
        %v392 = vpop.permute.xlu0 %391
        %395 = vset.pattern.permute.xlu0 0
        %396 = vperm.xlu0 %395, %v375
        %v397 = vpop.permute.xlu0 %396
        %400 = vset.pattern.permute.xlu0 0
        %401 = vperm.xlu0 %400, %v376
        %v402 = vpop.permute.xlu0 %401
        %405 = vset.pattern.permute.xlu0 0
        %406 = vperm.xlu0 %405, %v377
        %v407 = vpop.permute.xlu0 %406
        %410 = vset.pattern.permute.xlu0 0
        %411 = vperm.xlu0 %410, %v378
        %v412 = vpop.permute.xlu0 %411
        %415 = vset.pattern.permute.xlu0 0
        %416 = vperm.xlu0 %415, %v379
        %v417 = vpop.permute.xlu0 %416
        %420 = vset.pattern.permute.xlu0 0
        %421 = vperm.xlu0 %420, %v380
        %v422 = vpop.permute.xlu0 %421
        %v432 = vunpack.c.l.b16 %v365
        %v433 = vunpack.c.l.b16 %v366
        %v434 = vunpack.c.l.b16 %v367
        %v435 = vunpack.c.l.b16 %v368
        %v436 = vunpack.c.l.b16 %v369
        %v437 = vunpack.c.l.b16 %v370
        %v438 = vunpack.c.l.b16 %v371
        %v439 = vunpack.c.l.b16 %v372
        %v440 = vpack.c.b16 %v433, %v432
        %v441 = vpack.c.b16 %v435, %v434
        %v442 = vpack.c.b16 %v437, %v436
        %v443 = vpack.c.b16 %v439, %v438
        %vm444 = vcmask 31744
        %v446 = vsel %vm444, %v440, 0
        %v449 = vsel %vm444, %v441, 0
        %v452 = vsel %vm444, %v442, 0
        %v455 = vsel %vm444, %v443, 0
        %vm457 = vcmask 1041408
        %v459 = vsel %vm457, %v364, 0
        %461 = vmatprep.subr.bf16.mxu0 0
        %462 = vmatpush1.bf16.msra.mxu0 0
        %463 = vmatprep.subr.bf16.mxu0 0
        %464 = vmatpush1.bf16.msra.mxu0 0
        %465 = vmatprep.subr.bf16.mxu0 0
        %466 = vmatpush1.bf16.msra.mxu0 0
        %467 = vmatprep.subr.bf16.mxu0 0
        %468 = vmatpush1.bf16.msra.mxu0 0
        %469 = vmatprep.subr.bf16.mxu0 0
        %470 = vmatpush1.bf16.msra.mxu0 0
        %471 = vmatprep.subr.bf16.mxu0 0
        %472 = vmatpush1.bf16.msra.mxu0 0
        %473 = vmatprep.subr.bf16.mxu0 0
        %474 = vmatpush1.bf16.msra.mxu0 0
        %475 = vmatprep.subr.bf16.mxu0 0
        %476 = vmatpush1.bf16.msra.mxu0 %v459
        %477 = vmatprep.subr.bf16.mxu0 0
        %478 = vmatpush2.bf16.msra.mxu0 0
        %479 = vmatprep.subr.bf16.mxu0 0
        %480 = vmatpush2.bf16.msra.mxu0 0
        %481 = vmatprep.subr.bf16.mxu0 0
        %482 = vmatpush2.bf16.msra.mxu0 0
        %483 = vmatprep.subr.bf16.mxu0 0
        %484 = vmatpush2.bf16.msra.mxu0 0
        %485 = vmatprep.subr.bf16.mxu0 0
        %486 = vmatpush2.bf16.msra.mxu0 0
        %487 = vmatprep.subr.bf16.mxu0 0
        %488 = vmatpush2.bf16.msra.mxu0 0
        %489 = vmatprep.subr.bf16.mxu0 0
        %490 = vmatpush2.bf16.msra.mxu0 0
        %491 = vmatprep.subr.bf16.mxu0 0
        %492 = vmatpush2.bf16.msra.mxu0 0
        %493 = vmatprep.mubr.bf16.mxu0 0
        %494 = vmatmul.mubr.bf16.gmra.mxu0 %v446
        %v495 = vpop.f32.mrf.mxu0
        %v496 = vadd.f32 %v387, %v495
        %v497 = vpop.f32.mrf.mxu0
        %v498 = vpop.f32.mrf.mxu0
        %v499 = vadd.f32 %v392, %v498
        %v500 = vpop.f32.mrf.mxu0
        %501 = vmatprep.mubr.bf16.mxu0 0
        %502 = vmatmul.mubr.bf16.gmra.mxu0 %v449
        %v503 = vpop.f32.mrf.mxu0
        %v504 = vadd.f32 %v397, %v503
        %v505 = vpop.f32.mrf.mxu0
        %v506 = vpop.f32.mrf.mxu0
        %v507 = vadd.f32 %v402, %v506
        %v508 = vpop.f32.mrf.mxu0
        %509 = vmatprep.mubr.bf16.mxu0 0
        %510 = vmatmul.mubr.bf16.gmra.mxu0 %v452
        %v511 = vpop.f32.mrf.mxu0
        %v512 = vadd.f32 %v407, %v511
        %v513 = vpop.f32.mrf.mxu0
        %v514 = vpop.f32.mrf.mxu0
        %v515 = vadd.f32 %v412, %v514
        %v516 = vpop.f32.mrf.mxu0
        %517 = vmatprep.mubr.bf16.mxu0 0
        %518 = vmatmul.mubr.bf16.gmra.mxu0 %v455
        %v519 = vpop.f32.mrf.mxu0
        %v520 = vadd.f32 %v417, %v519
        %v521 = vpop.f32.mrf.mxu0
        %v522 = vpop.f32.mrf.mxu0
        %v523 = vadd.f32 %v422, %v522
        %v524 = vpop.f32.mrf.mxu0
        %525 = vdwg.mxu0
        %v526 = vmax.f32 %v496, %v512
        %v527 = vmax.f32 %v499, %v515
        %v528 = vmax.f32 %v504, %v520
        %v529 = vmax.f32 %v507, %v523
        %v530 = vmax.f32 %v526, %v527
        %v531 = vmax.f32 %v528, %v529
        %v532 = vmax.f32 %v530, %v531
        %v533 = vrot.slane %v532, 4
        %v534 = vmax.f32 %v532, %v533
        %v535 = vrot.slane %v534, 2
        %v536 = vmax.f32 %v534, %v535
        %v537 = vrot.slane %v536, 1
        %v538 = vmax.f32 %v536, %v537
        %v539 = vsub.f32 %v496, %v538
        %v540 = vsub.f32 %v499, %v538
        %v541 = vsub.f32 %v504, %v538
        %v542 = vsub.f32 %v507, %v538
        %v543 = vsub.f32 %v512, %v538
        %v544 = vsub.f32 %v515, %v538
        %v545 = vsub.f32 %v520, %v538
        %v546 = vsub.f32 %v523, %v538
        %v547 = vmul.f32 %v539, 1.442695
        %v548 = vpow.pop %v547
        %v549 = vmul.f32 %v540, 1.442695
        %v550 = vpow.pop %v549
        %v551 = vmul.f32 %v541, 1.442695
        %v552 = vpow.pop %v551
        %v553 = vmul.f32 %v542, 1.442695
        %v554 = vpow.pop %v553
        %v555 = vmul.f32 %v543, 1.442695
        %v556 = vpow.pop %v555
        %v557 = vmul.f32 %v544, 1.442695
        %v558 = vpow.pop %v557
        %v559 = vmul.f32 %v545, 1.442695
        %v560 = vpow.pop %v559
        %v561 = vmul.f32 %v546, 1.442695
        %v562 = vpow.pop %v561
        %v563 = vadd.f32 %v548, %v550
        %v564 = vadd.f32 %v563, %v552
        %v565 = vadd.f32 %v564, %v554
        %v566 = vadd.f32 %v565, %v556
        %v567 = vadd.f32 %v566, %v558
        %v568 = vadd.f32 %v567, %v560
        %v569 = vadd.f32 %v568, %v562
        %v570 = vrot.slane %v569, 4
        %v571 = vadd.f32 %v569, %v570
        %v572 = vrot.slane %v571, 2
        %v573 = vadd.f32 %v571, %v572
        %v574 = vrot.slane %v573, 1
        %v575 = vadd.f32 %v573, %v574
        %v576 = vpack.c.bf16 %v550, %v548
        %v577 = vpack.c.bf16 %v554, %v552
        %v578 = vpack.c.bf16 %v558, %v556
        %v579 = vpack.c.bf16 %v562, %v560
        %vm580 = vcmask 523264
        %v582 = vsel %vm580, %v381, 0
        %584 = vmatprep.subr.bf16.mxu0 0
        %585 = vmatpush1.bf16.msra.mxu0 0
        %586 = vmatprep.subr.bf16.mxu0 0
        %587 = vmatpush1.bf16.msra.mxu0 0
        %588 = vmatprep.subr.bf16.mxu0 0
        %589 = vmatpush1.bf16.msra.mxu0 0
        %590 = vmatprep.subr.bf16.mxu0 0
        %591 = vmatpush1.bf16.msra.mxu0 0
        %592 = vmatprep.subr.bf16.mxu0 0
        %593 = vmatpush1.bf16.msra.mxu0 %v579
        %594 = vmatprep.subr.bf16.mxu0 0
        %595 = vmatpush1.bf16.msra.mxu0 %v578
        %596 = vmatprep.subr.bf16.mxu0 0
        %597 = vmatpush1.bf16.msra.mxu0 %v577
        %598 = vmatprep.subr.bf16.mxu0 0
        %599 = vmatpush1.bf16.msra.mxu0 %v576
        %600 = vmatprep.subr.bf16.mxu0 0
        %601 = vmatpush2.bf16.msra.mxu0 0
        %602 = vmatprep.subr.bf16.mxu0 0
        %603 = vmatpush2.bf16.msra.mxu0 0
        %604 = vmatprep.subr.bf16.mxu0 0
        %605 = vmatpush2.bf16.msra.mxu0 0
        %606 = vmatprep.subr.bf16.mxu0 0
        %607 = vmatpush2.bf16.msra.mxu0 0
        %608 = vmatprep.subr.bf16.mxu0 0
        %609 = vmatpush2.bf16.msra.mxu0 0
        %610 = vmatprep.subr.bf16.mxu0 0
        %611 = vmatpush2.bf16.msra.mxu0 0
        %612 = vmatprep.subr.bf16.mxu0 0
        %613 = vmatpush2.bf16.msra.mxu0 0
        %614 = vmatprep.subr.bf16.mxu0 0
        %615 = vmatpush2.bf16.msra.mxu0 0
        %616 = vmatprep.mubr.bf16.mxu0 0
        %617 = vmatmul.mubr.bf16.gmra.mxu0 %v582
        %v618 = vpop.f32.mrf.mxu0
        %v619 = vadd.f32 0.0, %v618
        %v620 = vpop.f32.mrf.mxu0
        %v621 = vpop.f32.mrf.mxu0
        %v622 = vpop.f32.mrf.mxu0
        %623 = vdwg.mxu0
        %v624 = vrcp.pop %v575
        %v625 = vmul.f32 %v619, %v624
        %627 = vset.pattern.permute.xlu0 0
        %628 = vperm.xlu0 %627, %v383
        %v629 = vpop.permute.xlu0 %628
        %v631 = vadd.f32 %v625, %v629
        %v632 = vadd.f32 %v631, %v382
        %633 = vst [vmem:[%s332] sm:$0xff] %v632
        %s634 = sand.u32 %s197, 1
        %s635 = scalar_lea.sflag [#allocation3], %s634
        %s636 = sand.u32 %s197, 1
        %s637 = smul.addr %s636, 8
        %s638 = scalar_lea.vmem [#allocation2], %s637
        // Predicated region
        $region45: #{tpu_custom_call.1} parent=43 // pred_check
          %p639 = pneg %p207
        $region46: #{tpu_custom_call.1} parent=43 // pred_check_branch
          %641 = sbr.rel (%p639) target = $region48
        $region47: #{tpu_custom_call.1} parent=43 // pred_region
          %s643 = ssub.s32 128, 128
          %644 = vsyncadd %s635, %s643
          %s645 = smul.addr %s24, 2
          %s646 = sadd.s32 %s25, %s645
          %s647 = smul.addr %s646, 128
          %s648 = scalar_lea.hbm %s6, %s647
          %s650 = sshll.u32 %s638, 4
          %s651 = int_to_ptr.vmem [resolvable:$true] %s650
          %653 = dma.vmem_to_hbm [thread:$0]  %s651, 128, %s648, %s635
        $region48: #{tpu_custom_call.1} parent=43 // pred_fallthru
          _
      $region44: #{tpu_custom_call.1} parent=5 // pred_fallthru
        _
      %p654 = scmp.le.s32.totalorder 2, %s15
      // Predicated region
      $region49: #{tpu_custom_call.1} parent=5 // pred_check
        %p655 = pneg %p654
      $region50: #{tpu_custom_call.1} parent=5 // pred_check_branch
        %657 = sbr.rel (%p655) target = $region52
      $region51: #{tpu_custom_call.1} parent=5 // pred_region
        %s658 = ssub.s32 %s15, 2
        // Predicated region
        $region53: #{tpu_custom_call.1} parent=51 // pred_check
          %p659 = pneg %p213
        $region54: #{tpu_custom_call.1} parent=51 // pred_check_branch
          %661 = sbr.rel (%p659) target = $region56
        $region55: #{tpu_custom_call.1} parent=51 // pred_region
          %s662 = sand.u32 %s198, 1
          %s663 = scalar_lea.sflag [#allocation3], %s662
          %s664 = sand.u32 %s198, 1
          %s665 = smul.addr %s664, 8
          %s666 = scalar_lea.vmem [#allocation2], %s665
          %667 = dma.done %s663, 128
        $region56: #{tpu_custom_call.1} parent=51 // pred_fallthru
          _
      $region52: #{tpu_custom_call.1} parent=5 // pred_fallthru
        _
    $region6: #{tpu_custom_call.1} parent=1 // loop_footer
      %s19 = sadd.s32 1, %s15
    $region7: #{tpu_custom_call.1} parent=1 // loop_footer_branch
      %14 = sbr.rel target = $region3
    $region8: #{tpu_custom_call.1} parent=1 // loop_exit
      _
    %668 = vsyncpa [#allocation3], 1
    %s669 = scalar_lea.sflag [#allocation3], 1
    %670 = vsyncpa %s669, 1

</llo_original>
